<compile_context>
chip_gen: v6e
topology: v6e:2x2x1
jax: 0.10.0
libtpu: 0.0.40
codegen_flags: <defaults>
</compile_context>

<pallas_src>
import functools

import jax
import jax.numpy as jnp
from jax.experimental import pallas as pl
from jax.experimental.pallas import tpu as pltpu

EPS = 1e-5  # nn.BatchNorm2d default


# -----------------------------------------------------------------------------
# Single-pass kernel: full HW extent per block, channel-tiled grid.
# -----------------------------------------------------------------------------
def _switchable_bn_kernel(x_ref, sw_ref, w_ref, b_ref, o_ref, *,
                          num_switches, count_hw):
    """x_ref: (N, TC, HW); sw_ref: (1, N) i32; w_ref/b_ref: (TC, S)."""
    f32 = jnp.float32
    s = num_switches

    sw = sw_ref[...]                                               # (1, N) int32
    n = sw.shape[1]
    onehot = (jax.lax.broadcasted_iota(jnp.int32, (s, n), 0) == sw).astype(f32)
    cnt = jnp.sum(onehot, axis=1)[None, :] * float(count_hw)       # (1, S)
    cnt_safe = jnp.maximum(cnt, 1.0)                               # empty groups

    # (N, TC) x (S, N) -> (TC, S): aggregate per-sample rows into groups.
    agg_dims = (((0,), (1,)), ((), ()))
    # (S, N) x (K, S) -> (N, K): gather group rows back to samples.
    gather_dims = (((0,), (1,)), ((), ()))

    # Scan 1: per-sample sums over HW.  Re-read x_ref in every scan instead of
    # binding one f32 upcast copy live across the whole body (VMEM pressure).
    s1_nc = jnp.sum(x_ref[...].astype(f32), axis=2)                # (N, TC)
    mean_cs = jax.lax.dot_general(s1_nc, onehot, agg_dims,
                                  preferred_element_type=f32) / cnt_safe  # (TC, S)
    mean_nc = jax.lax.dot_general(onehot, mean_cs, gather_dims,
                                  preferred_element_type=f32)      # (N, TC)

    # Scan 2: group-mean-centered second moment (numerically robust variance;
    # x is already resident in VMEM so the extra scan is ~free vs HBM stream).
    d = x_ref[...].astype(f32) - mean_nc[:, :, None]
    ssq_nc = jnp.sum(d * d, axis=2)                                # (N, TC)
    var_cs = jax.lax.dot_general(ssq_nc, onehot, agg_dims,
                                 preferred_element_type=f32) / cnt_safe
    inv_cs = jax.lax.rsqrt(var_cs + EPS)                           # EUP slot

    scale_cs = w_ref[...].astype(f32) * inv_cs                     # (TC, S)
    shift_cs = b_ref[...].astype(f32) - mean_cs * scale_cs         # (TC, S)

    # Fused gather of scale & shift: a single small matmul round trip.
    both = jnp.concatenate([scale_cs, shift_cs], axis=0)           # (2*TC, S)
    both_nc = jax.lax.dot_general(onehot, both, gather_dims,
                                  preferred_element_type=f32)      # (N, 2*TC)
    tc = scale_cs.shape[0]
    scale_nc = both_nc[:, :tc]
    shift_nc = both_nc[:, tc:]

    # Scan 3: one FMA pass.  Samples whose switch id is outside [0, S) gather
    # scale = shift = 0 and produce zeros (documented behavior).
    o_ref[...] = (x_ref[...].astype(f32) * scale_nc[:, :, None]
                  + shift_nc[:, :, None]).astype(o_ref.dtype)


# -----------------------------------------------------------------------------
# Fallback path (huge N*HW slabs): stats pass + normalize pass, HW tiled too.
# -----------------------------------------------------------------------------
def _bn_stats_kernel(x_ref, s1_ref, s2_ref, *, hw_total, hw_tile):
    """Accumulate per-(sample, channel) raw moments over HW tiles.

    x_ref: (N, TC, THW); s1_ref/s2_ref: (TC, N) f32, resident across the HW axis.
    """
    h = pl.program_id(1)

    @pl.when(h == 0)
    def _init():
        s1_ref[...] = jnp.zeros_like(s1_ref)
        s2_ref[...] = jnp.zeros_like(s2_ref)

    x = x_ref[...].astype(jnp.float32)                             # (N, TC, THW)
    # The last HW tile may read past the end of the array; such loads are
    # garbage, so mask them out of the sums.
    col = jax.lax.broadcasted_iota(jnp.int32, x.shape, 2)
    x = jnp.where(col < (hw_total - h * hw_tile), x, 0.0)

    s1_ref[...] += jnp.sum(x, axis=2).T                            # (TC, N)
    s2_ref[...] += jnp.sum(x * x, axis=2).T


def _bn_norm_kernel(x_ref, sw_ref, s1_ref, s2_ref, w_ref, b_ref, o_ref, *,
                    num_switches, count_hw):
    """Normalize one (N, TC, THW) tile using precomputed per-sample moments."""
    f32 = jnp.float32
    s = num_switches

    sw = sw_ref[...]                                               # (1, N)
    n = sw.shape[1]
    onehot = (jax.lax.broadcasted_iota(jnp.int32, (s, n), 0) == sw).astype(f32)
    cnt = jnp.sum(onehot, axis=1)[None, :] * float(count_hw)       # (1, S)
    cnt_safe = jnp.maximum(cnt, 1.0)

    agg_dims = (((1,), (1,)), ((), ()))      # (TC, N) x (S, N) -> (TC, S)
    gather_dims = (((0,), (1,)), ((), ()))   # (S, N) x (K, S) -> (N, K)

    sum1_cs = jax.lax.dot_general(s1_ref[...], onehot, agg_dims,
                                  preferred_element_type=f32)
    sum2_cs = jax.lax.dot_general(s2_ref[...], onehot, agg_dims,
                                  preferred_element_type=f32)
    mean_cs = sum1_cs / cnt_safe
    # TODO(synk): raw-moment variance can lose precision when |mean| >> std;
    # the single-pass path uses a centered second scan instead.
    var_cs = jnp.maximum(sum2_cs / cnt_safe - mean_cs * mean_cs, 0.0)
    inv_cs = jax.lax.rsqrt(var_cs + EPS)

    scale_cs = w_ref[...].astype(f32) * inv_cs
    shift_cs = b_ref[...].astype(f32) - mean_cs * scale_cs

    both = jnp.concatenate([scale_cs, shift_cs], axis=0)           # (2*TC, S)
    both_nc = jax.lax.dot_general(onehot, both, gather_dims,
                                  preferred_element_type=f32)      # (N, 2*TC)
    tc = scale_cs.shape[0]
    scale_nc = both_nc[:, :tc]
    shift_nc = both_nc[:, tc:]

    o_ref[...] = (x_ref[...].astype(f32) * scale_nc[:, :, None]
                  + shift_nc[:, :, None]).astype(o_ref.dtype)


# -----------------------------------------------------------------------------
# Tile planning: never exceed the per-generation VMEM budget.
# -----------------------------------------------------------------------------
def _tpu_vmem_bytes():
    """Physical per-core VMEM (128 MiB on v5e/v6e, 64 MiB on v7x)."""
    try:
        return int(pltpu.get_tpu_info().vmem_capacity_bytes)
    except Exception:
        return 64 * 1024 * 1024  # conservative (v7x-sized) if the query fails


def _plan_tiles(N, C, HW, itemsize, block_budget_bytes=None):
    vmem_cap = _tpu_vmem_bytes()
    # Leave ~20% headroom for Mosaic-internal scratch and the small switch /
    # weight / bias buffers (v7x only has 64 MiB physical per TensorCore).
    vmem_limit = int(vmem_cap * 0.8)
    budget = vmem_limit if block_budget_bytes is None else int(block_budget_bytes)

    # Single-pass live set per channel: double-buffered input + output blocks
    # (2 + 2 at `itemsize`) plus ~3 f32-wide temporaries inside the body.
    sp_bytes_per_chan = N * HW * (4 * itemsize + 12)
    max_c = budget // sp_bytes_per_chan

    if max_c >= min(C, 8):
        if C <= 8:
            c_tile = C                        # full-extent block, always legal
        else:
            # Big blocks amortize the ~0.35 us/step grid overhead, but keep
            # ~8 grid steps so the pipeline overlaps DMA with compute and
            # megacore (v7x) has work for both TensorCores.
            target_steps = 8
            pref = ((max(1, -(-C // target_steps)) + 7) // 8) * 8
            c_tile = max(8, min((max_c // 8) * 8, pref))
        return dict(single_pass=True, c_tile=int(c_tile), hw_tile=HW,
                    vmem_limit=vmem_limit)

    # Even an 8-channel slab with the full HW extent does not fit: tile HW too
    # and split the op into a stats pass and a normalize pass (two HBM scans).
    c_tile = C if C <= 8 else 8
    fb_bytes_per_hw = N * c_tile * (4 * itemsize + 8)
    hw_tile = max(128, (budget // fb_bytes_per_hw) // 128 * 128)
    hw_tile = min(hw_tile, ((HW + 127) // 128) * 128)
    return dict(single_pass=False, c_tile=int(c_tile), hw_tile=int(hw_tile),
                vmem_limit=vmem_limit)


# -----------------------------------------------------------------------------
# Wrapper
# -----------------------------------------------------------------------------
def switchable_bn_batch(x, switch, weight, bias, *, block_budget_bytes=None):
    """x: (N, C, H, W); switch: (N,) int; weight/bias: (S, C)."""
    N, C, H, W = x.shape
    S = weight.shape[0]
    HW = H * W

    xr = x.reshape(N, C, HW)
    swr = switch.astype(jnp.int32).reshape(1, N)
    # (C, S) orientation: the tiny full-extent S axis sits on the lane dim, so
    # channel tiles only need 8-row sublane alignment instead of 128 lanes.
    w_cs = jnp.transpose(weight)
    b_cs = jnp.transpose(bias)

    plan = _plan_tiles(N, C, HW, x.dtype.itemsize, block_budget_bytes)
    c_tile = plan["c_tile"]

    if plan["single_pass"]:
        grid = (pl.cdiv(C, c_tile),)
        out = pl.pallas_call(
            functools.partial(_switchable_bn_kernel, num_switches=S, count_hw=HW),
            out_shape=jax.ShapeDtypeStruct((N, C, HW), x.dtype),
            grid=grid,
            in_specs=[
                pl.BlockSpec((N, c_tile, HW), lambda c: (0, c, 0)),   # x
                pl.BlockSpec((1, N), lambda c: (0, 0)),               # switch ids
                pl.BlockSpec((c_tile, S), lambda c: (c, 0)),          # weight^T
                pl.BlockSpec((c_tile, S), lambda c: (c, 0)),          # bias^T
            ],
            out_specs=pl.BlockSpec((N, c_tile, HW), lambda c: (0, c, 0)),
            compiler_params=pltpu.CompilerParams(
                dimension_semantics=("parallel",),
                vmem_limit_bytes=plan["vmem_limit"],
            ),
        )(xr, swr, w_cs, b_cs)
        return out.reshape(N, C, H, W)

    # ---- Fallback: two passes with HW tiling (for very large N*HW slabs). ----
    hw_tile = plan["hw_tile"]
    grid = (pl.cdiv(C, c_tile), pl.cdiv(HW, hw_tile))

    s1_cn, s2_cn = pl.pallas_call(
        functools.partial(_bn_stats_kernel, hw_total=HW, hw_tile=hw_tile),
        out_shape=(jax.ShapeDtypeStruct((C, N), jnp.float32),
                   jax.ShapeDtypeStruct((C, N), jnp.float32)),
        grid=grid,
        in_specs=[pl.BlockSpec((N, c_tile, hw_tile), lambda c, h: (0, c, h))],
        out_specs=(pl.BlockSpec((c_tile, N), lambda c, h: (c, 0)),
                   pl.BlockSpec((c_tile, N), lambda c, h: (c, 0))),
        compiler_params=pltpu.CompilerParams(
            dimension_semantics=("parallel", "arbitrary"),   # HW is a reduction
            vmem_limit_bytes=plan["vmem_limit"],
        ),
    )(xr)

    out = pl.pallas_call(
        functools.partial(_bn_norm_kernel, num_switches=S, count_hw=HW),
        out_shape=jax.ShapeDtypeStruct((N, C, HW), x.dtype),
        grid=grid,
        in_specs=[
            pl.BlockSpec((N, c_tile, hw_tile), lambda c, h: (0, c, h)),  # x
            pl.BlockSpec((1, N), lambda c, h: (0, 0)),                   # switch
            pl.BlockSpec((c_tile, N), lambda c, h: (c, 0)),              # s1
            pl.BlockSpec((c_tile, N), lambda c, h: (c, 0)),              # s2
            pl.BlockSpec((c_tile, S), lambda c, h: (c, 0)),              # weight^T
            pl.BlockSpec((c_tile, S), lambda c, h: (c, 0)),              # bias^T
        ],
        out_specs=pl.BlockSpec((N, c_tile, hw_tile), lambda c, h: (0, c, h)),
        compiler_params=pltpu.CompilerParams(
            dimension_semantics=("parallel", "parallel"),
            vmem_limit_bytes=plan["vmem_limit"],
        ),
    )(xr, swr, s1_cn, s2_cn, w_cs, b_cs)
    return out.reshape(N, C, H, W)


# -----------------------------------------------------------------------------
# Pure-JAX reference of the PyTorch forward (training-mode BN, per-group stats)
# -----------------------------------------------------------------------------
def reference(x, switch, weight, bias):
    out = jnp.zeros_like(x)
    for g in range(weight.shape[0]):
        m = switch == g
        if not bool(jnp.any(m)):
            continue
        xg = x[m]                                           # (Ng, C, H, W)
        mean = xg.mean(axis=(0, 2, 3))
        var = xg.var(axis=(0, 2, 3))                        # biased
        yg = (xg - mean[None, :, None, None]) * jax.lax.rsqrt(
            var + EPS)[None, :, None, None]
        yg = yg * weight[g][None, :, None, None] + bias[g][None, :, None, None]
        out = out.at[m].set(yg)
    return out


if __name__ == "__main__":
    key = jax.random.PRNGKey(0)
    kx, kw, kb, kx2, kw2, kb2 = jax.random.split(key, 6)

    # Test 1: single-pass path. (N, C, H, W) = (4, 4, 16, 16), S = 2.
    N, C, H, W, S = 4, 4, 16, 16, 2
    x = jax.random.normal(kx, (N, C, H, W), dtype=jnp.float32)
    switch = jnp.array([0, 1, 0, 1], dtype=jnp.int32)
    weight = 1.0 + 0.1 * jax.random.normal(kw, (S, C), dtype=jnp.float32)
    bias = 0.1 * jax.random.normal(kb, (S, C), dtype=jnp.float32)

    out = jax.block_until_ready(switchable_bn_batch(x, switch, weight, bias))
    ref = reference(x, switch, weight, bias)
    assert out.shape == x.shape and out.dtype == x.dtype
    assert jnp.allclose(out, ref, atol=1e-4, rtol=1e-4)

    # Test 2: force the two-pass HW-tiled fallback with a tiny block budget
    # (exercises HW-edge masking: 13*13 = 169 is not a multiple of 128).
    N2, C2, H2, W2, S2 = 4, 8, 13, 13, 3
    x2 = 0.5 + jax.random.normal(kx2, (N2, C2, H2, W2), dtype=jnp.float32)
    switch2 = jnp.array([0, 2, 1, 2], dtype=jnp.int32)
    weight2 = 1.0 + 0.1 * jax.random.normal(kw2, (S2, C2), dtype=jnp.float32)
    bias2 = 0.1 * jax.random.normal(kb2, (S2, C2), dtype=jnp.float32)

    out2 = jax.block_until_ready(
        switchable_bn_batch(x2, switch2, weight2, bias2,
                            block_budget_bytes=64 * 1024))
    ref2 = reference(x2, switch2, weight2, bias2)
    assert out2.shape == x2.shape and out2.dtype == x2.dtype
    assert jnp.allclose(out2, ref2, atol=1e-4, rtol=1e-4)

    print("KERNEL_OK")
</pallas_src>

<mosaic_0001>
module attributes {stable_mosaic.version = 11 : i64} {
  func.func @_switchable_bn_kernel(%arg0: i32, %arg1: memref<4x4x256xf32, #tpu.memory_space<vmem>>, %arg2: memref<1x4xi32, #tpu.memory_space<vmem>>, %arg3: memref<4x2xf32, #tpu.memory_space<vmem>>, %arg4: memref<4x2xf32, #tpu.memory_space<vmem>>, %arg5: memref<4x4x256xf32, #tpu.memory_space<vmem>>) attributes {dimension_semantics = [#tpu.dimension_semantics<parallel>], iteration_bounds = array<i64: 1>, scalar_prefetch = 0 : i64, scratch_operands = 0 : i64, tpu.core_type = #tpu.core_type<tc>, window_params = [{transform_indices = @transform_0, window_bounds = array<i64: 4, 4, 256>}, {pipeline_mode = #tpu.pipeline_mode<synchronous>, transform_indices = @transform_1, window_bounds = array<i64: 1, 4>}, {transform_indices = @transform_2, window_bounds = array<i64: 4, 2>}, {transform_indices = @transform_3, window_bounds = array<i64: 4, 2>}, {transform_indices = @transform_4, window_bounds = array<i64: 4, 4, 256>}]} {
    %c0 = arith.constant 0 : index
    %c0_0 = arith.constant 0 : index
    %0 = vector.load %arg2[%c0, %c0_0] : memref<1x4xi32, #tpu.memory_space<vmem>>, vector<1x4xi32>
    %1 = tpu.iota {dimensions = array<i32: 0>} : vector<2x4xi32>
    %2 = vector.broadcast %0 : vector<1x4xi32> to vector<2x4xi32>
    %3 = arith.cmpi eq, %1, %2 : vector<2x4xi32>
    %4 = arith.extui %3 : vector<2x4xi1> to vector<2x4xi32>
    %5 = arith.sitofp %4 : vector<2x4xi32> to vector<2x4xf32>
    %cst = arith.constant dense<0.000000e+00> : vector<2xf32>
    %6 = vector.multi_reduction <add>, %5, %cst [1] : vector<2x4xf32> to vector<2xf32>
    %7 = vector.shape_cast %6 : vector<2xf32> to vector<1x2xf32>
    %cst_1 = arith.constant 2.560000e+02 : f32
    %8 = vector.broadcast %cst_1 : f32 to vector<1x2xf32>
    %9 = arith.mulf %7, %8 : vector<1x2xf32>
    %cst_2 = arith.constant 1.000000e+00 : f32
    %10 = vector.broadcast %cst_2 : f32 to vector<1x2xf32>
    %11 = arith.maximumf %9, %10 : vector<1x2xf32>
    %c0_3 = arith.constant 0 : index
    %c0_4 = arith.constant 0 : index
    %c0_5 = arith.constant 0 : index
    %12 = vector.load %arg1[%c0_3, %c0_4, %c0_5] : memref<4x4x256xf32, #tpu.memory_space<vmem>>, vector<4x4x256xf32>
    %cst_6 = arith.constant dense<0.000000e+00> : vector<4x4xf32>
    %13 = vector.multi_reduction <add>, %12, %cst_6 [2] : vector<4x4x256xf32> to vector<4x4xf32>
    %cst_7 = arith.constant dense<0.000000e+00> : vector<4x2xf32>
    %14 = tpu.matmul %13, %5, %cst_7 {dimension_numbers = #tpu.dot_dimension_numbers<[0], [1], [1], [0], [0, 1, 1, 0], [], []>} : vector<4x4xf32>, vector<2x4xf32>, vector<4x2xf32> -> vector<4x2xf32>
    %15 = vector.broadcast %11 : vector<1x2xf32> to vector<4x2xf32>
    %16 = arith.divf %14, %15 : vector<4x2xf32>
    %cst_8 = arith.constant dense<0.000000e+00> : vector<4x4xf32>
    %17 = tpu.matmul %5, %16, %cst_8 {dimension_numbers = #tpu.dot_dimension_numbers<[0], [1], [1], [0], [0, 1, 1, 0], [], []>} : vector<2x4xf32>, vector<4x2xf32>, vector<4x4xf32> -> vector<4x4xf32>
    %c0_9 = arith.constant 0 : index
    %c0_10 = arith.constant 0 : index
    %c0_11 = arith.constant 0 : index
    %18 = vector.load %arg1[%c0_9, %c0_10, %c0_11] : memref<4x4x256xf32, #tpu.memory_space<vmem>>, vector<4x4x256xf32>
    %19 = vector.shape_cast %17 : vector<4x4xf32> to vector<4x4x1xf32>
    %20 = vector.broadcast %19 : vector<4x4x1xf32> to vector<4x4x256xf32>
    %21 = arith.subf %18, %20 : vector<4x4x256xf32>
    %22 = arith.mulf %21, %21 : vector<4x4x256xf32>
    %cst_12 = arith.constant dense<0.000000e+00> : vector<4x4xf32>
    %23 = vector.multi_reduction <add>, %22, %cst_12 [2] : vector<4x4x256xf32> to vector<4x4xf32>
    %cst_13 = arith.constant dense<0.000000e+00> : vector<4x2xf32>
    %24 = tpu.matmul %23, %5, %cst_13 {dimension_numbers = #tpu.dot_dimension_numbers<[0], [1], [1], [0], [0, 1, 1, 0], [], []>} : vector<4x4xf32>, vector<2x4xf32>, vector<4x2xf32> -> vector<4x2xf32>
    %25 = vector.broadcast %11 : vector<1x2xf32> to vector<4x2xf32>
    %26 = arith.divf %24, %25 : vector<4x2xf32>
    %cst_14 = arith.constant 9.99999974E-6 : f32
    %27 = vector.broadcast %cst_14 : f32 to vector<4x2xf32>
    %28 = arith.addf %26, %27 : vector<4x2xf32>
    %29 = math.rsqrt %28 : vector<4x2xf32>
    %c0_15 = arith.constant 0 : index
    %c0_16 = arith.constant 0 : index
    %30 = vector.load %arg3[%c0_15, %c0_16] : memref<4x2xf32, #tpu.memory_space<vmem>>, vector<4x2xf32>
    %31 = arith.mulf %30, %29 : vector<4x2xf32>
    %c0_17 = arith.constant 0 : index
    %c0_18 = arith.constant 0 : index
    %32 = vector.load %arg4[%c0_17, %c0_18] : memref<4x2xf32, #tpu.memory_space<vmem>>, vector<4x2xf32>
    %33 = arith.mulf %16, %31 : vector<4x2xf32>
    %34 = arith.subf %32, %33 : vector<4x2xf32>
    %35 = tpu.concatenate %31, %34 in 0 : vector<4x2xf32>, vector<4x2xf32> -> vector<8x2xf32>
    %cst_19 = arith.constant dense<0.000000e+00> : vector<4x8xf32>
    %36 = tpu.matmul %5, %35, %cst_19 {dimension_numbers = #tpu.dot_dimension_numbers<[0], [1], [1], [0], [0, 1, 1, 0], [], []>} : vector<2x4xf32>, vector<8x2xf32>, vector<4x8xf32> -> vector<4x8xf32>
    %37 = vector.extract_strided_slice %36 {offsets = [0, 0], sizes = [4, 4], strides = [1, 1]} : vector<4x8xf32> to vector<4x4xf32>
    %38 = vector.extract_strided_slice %36 {offsets = [0, 4], sizes = [4, 4], strides = [1, 1]} : vector<4x8xf32> to vector<4x4xf32>
    %c0_20 = arith.constant 0 : index
    %c0_21 = arith.constant 0 : index
    %c0_22 = arith.constant 0 : index
    %39 = vector.load %arg1[%c0_20, %c0_21, %c0_22] : memref<4x4x256xf32, #tpu.memory_space<vmem>>, vector<4x4x256xf32>
    %40 = vector.shape_cast %37 : vector<4x4xf32> to vector<4x4x1xf32>
    %41 = vector.broadcast %40 : vector<4x4x1xf32> to vector<4x4x256xf32>
    %42 = arith.mulf %39, %41 : vector<4x4x256xf32>
    %43 = vector.shape_cast %38 : vector<4x4xf32> to vector<4x4x1xf32>
    %44 = vector.broadcast %43 : vector<4x4x1xf32> to vector<4x4x256xf32>
    %45 = arith.addf %42, %44 : vector<4x4x256xf32>
    %c0_23 = arith.constant 0 : index
    %c0_24 = arith.constant 0 : index
    %c0_25 = arith.constant 0 : index
    %46 = vector.load %arg5[%c0_23, %c0_24, %c0_25] : memref<4x4x256xf32, #tpu.memory_space<vmem>>, vector<4x4x256xf32>
    tpu.vector_store %arg5[%c0_23, %c0_24, %c0_25], %45 {strides = array<i32>} : memref<4x4x256xf32, #tpu.memory_space<vmem>>, vector<4x4x256xf32>,
    return
  }
  func.func @transform_0(%arg0: i32) -> (i32, i32, i32) {
    %c0_i32 = arith.constant 0 : i32
    %c0_i32_0 = arith.constant 0 : i32
    %c0_i32_1 = arith.constant 0 : i32
    return %c0_i32, %arg0, %c0_i32_0 : i32, i32, i32
  }
  func.func @transform_1(%arg0: i32) -> (i32, i32) {
    %c0_i32 = arith.constant 0 : i32
    %c0_i32_0 = arith.constant 0 : i32
    %c0_i32_1 = arith.constant 0 : i32
    return %c0_i32, %c0_i32_0 : i32, i32
  }
  func.func @transform_2(%arg0: i32) -> (i32, i32) {
    %c0_i32 = arith.constant 0 : i32
    %c0_i32_0 = arith.constant 0 : i32
    return %arg0, %c0_i32 : i32, i32
  }
  func.func @transform_3(%arg0: i32) -> (i32, i32) {
    %c0_i32 = arith.constant 0 : i32
    %c0_i32_0 = arith.constant 0 : i32
    return %arg0, %c0_i32 : i32, i32
  }
  func.func @transform_4(%arg0: i32) -> (i32, i32, i32) {
    %c0_i32 = arith.constant 0 : i32
    %c0_i32_0 = arith.constant 0 : i32
    %c0_i32_1 = arith.constant 0 : i32
    return %c0_i32, %arg0, %c0_i32_0 : i32, i32, i32
  }
}

</mosaic_0001>

<llo_original>
// kernel: tpu_custom_call.1
$region0: #{tpu_custom_call.1}
  #allocation0 [shape = 'u32[]', space=smem, size = 0x4, offset = 0x4, fixed_abs, tag = 'smem constant byte address 0x4 - core index']
  #allocation1 [shape = 'u32[144,128]{1,0:T(1,128)}', space=vmem, size = 0x12000, scoped, tag = 'internal scratch']
  %s0 = inlined_call_operand.hbm [shape: f32[4,4,256], index: 0, kind: input, shape index: {}]
  %s1 = inlined_call_operand.vmem [shape: s32[1,4], index: 1, kind: input, shape index: {}]
  %s2 = inlined_call_operand.vmem [shape: f32[4,2], index: 2, kind: input, shape index: {}]
  %s3 = inlined_call_operand.vmem [shape: f32[4,2], index: 3, kind: input, shape index: {}]
  %s4 = inlined_call_operand.hbm [shape: f32[4,4,256], index: 4, kind: output, shape index: {}]
  %s5 = sld [smem:[#allocation0]]
  $region30: #{tpu_custom_call.1} parent=0
    _
  %s7 = ssub.s32 1, %s5
  %s8 = scalar_select 0, %s7, %s5
  $region1: #{tpu_custom_call.1} parent=0
    #allocation2 [shape = 'u8[16384]{0}', space=vmem, size = 0x4000, scoped, tag = 'input window, operand 0, single buffered']
    #allocation3 [shape = 's32[1]{0}', space=sflag, size = 0x4, scoped, tag = 'scoped memory for tpu_custom_call.1']
    #allocation4 [shape = 's32[1]{0}', space=sflag, size = 0x4, scoped, tag = 'scoped memory for tpu_custom_call.1']
    #allocation5 [shape = 'u8[16384]{0}', space=vmem, size = 0x4000, scoped, tag = 'output window, operand 0, single buffered']
    %9 = vsyncpa [#allocation3], 0
    %10 = vsyncpa [#allocation4], 0
    // Predicated region
    $region2: #{tpu_custom_call.1} parent=1 // pred_check
      _
    $region3: #{tpu_custom_call.1} parent=1 // pred_check_branch
      %12 = sbr.rel (0) target = $region5
    $region4: #{tpu_custom_call.1} parent=1 // pred_region
      %s14 = ssub.s32 512, 512
      %15 = vsyncadd [#allocation3], %s14
      %s16 = sshll.u32 [#allocation2], 4
      %s17 = int_to_ptr.vmem [resolvable:$true] %s16
      %22 = dma.hbm_to_vmem [thread:$0]  %s0, 512, %s17, [#allocation3], 128, 128, 8
    $region5: #{tpu_custom_call.1} parent=1 // pred_fallthru
      _
    // Predicated region
    $region6: #{tpu_custom_call.1} parent=1 // pred_check
      _
    $region7: #{tpu_custom_call.1} parent=1 // pred_check_branch
      %24 = sbr.rel (0) target = $region9
    $region8: #{tpu_custom_call.1} parent=1 // pred_region
      _
    $region9: #{tpu_custom_call.1} parent=1 // pred_fallthru
      _
    // Predicated region
    $region10: #{tpu_custom_call.1} parent=1 // pred_check
      _
    $region11: #{tpu_custom_call.1} parent=1 // pred_check_branch
      %26 = sbr.rel (0) target = $region13
    $region12: #{tpu_custom_call.1} parent=1 // pred_region
      _
    $region13: #{tpu_custom_call.1} parent=1 // pred_fallthru
      _
    // Predicated region
    $region14: #{tpu_custom_call.1} parent=1 // pred_check
      _
    $region15: #{tpu_custom_call.1} parent=1 // pred_check_branch
      %28 = sbr.rel (0) target = $region17
    $region16: #{tpu_custom_call.1} parent=1 // pred_region
      _
    $region17: #{tpu_custom_call.1} parent=1 // pred_fallthru
      _
    // Predicated region
    $region18: #{tpu_custom_call.1} parent=1 // pred_check
      _
    $region19: #{tpu_custom_call.1} parent=1 // pred_check_branch
      %30 = sbr.rel (0) target = $region21
    $region20: #{tpu_custom_call.1} parent=1 // pred_region
      %31 = dma.done [#allocation3], 512
    $region21: #{tpu_custom_call.1} parent=1 // pred_fallthru
      _
    %v32 = vld [vmem:[%s1] sm:$0x1]
    %v33 = vlaneseq
    %v34 = vshrl.u32 %v33, 7
    %v35 = vlaneseq
    %v36 = vshrl.u32 %v35, 7
    %v37 = vsub.s32 0, %v36
    %v38 = vrot.slane %v32, %v37
    %vm39 = vcmp.eq.s32.totalorder %v34, %v38
    %v40 = vsel %vm39, 1, 0
    %v41 = vcvt.s32.f32 %v40
    %vm42 = vcmask 25600
    %v43 = vsel %vm42, %v41, 0.0
    %44 = vadd.xlane.f32.xlu0 %v43
    %v45 = vpop.xlane.xlu0 %44
    %v46 = vmul.f32 %v45, 256.0
    %v47 = vmax.f32 %v46, 1.0
    %v48 = vld [vmem:[#allocation2] sm:$0xff]
    %v49 = vld [vmem:[#allocation2 + $0x8] sm:$0xff]
    %v50 = vld [vmem:[#allocation2 + $0x10] sm:$0xff]
    %v51 = vld [vmem:[#allocation2 + $0x18] sm:$0xff]
    %v56 = vcombine.high %v48, %v48
    %v57 = vcombine.high %v49, %v49
    %v58 = vcombine.high %v50, %v50
    %v59 = vcombine.high %v51, %v51
    %vm64 = vcmask 1043456
    %v65 = vsel %vm64, %v48, 0.0
    %v66 = vsel %vm64, %v56, 0.0
    %v67 = vadd.f32 %v65, %v66
    %68 = vadd.xlane.f32.xlu0 %v67
    %v69 = vpop.xlane.xlu0 %68
    %v70 = vsel %vm64, %v49, 0.0
    %v71 = vsel %vm64, %v57, 0.0
    %v72 = vadd.f32 %v70, %v71
    %73 = vadd.xlane.f32.xlu0 %v72
    %v74 = vpop.xlane.xlu0 %73
    %v75 = vsel %vm64, %v50, 0.0
    %v76 = vsel %vm64, %v58, 0.0
    %v77 = vadd.f32 %v75, %v76
    %78 = vadd.xlane.f32.xlu0 %v77
    %v79 = vpop.xlane.xlu0 %78
    %v80 = vsel %vm64, %v51, 0.0
    %v81 = vsel %vm64, %v59, 0.0
    %v82 = vadd.f32 %v80, %v81
    %83 = vadd.xlane.f32.xlu0 %v82
    %v84 = vpop.xlane.xlu0 %83
    %v89 = vlaneseq
    %v90 = vand.u32 %v89, 127
    %v91 = vlaneseq
    %v92 = vshrl.u32 %v91, 7
    %v93 = vsub.s32 %v90, %v92
    %v94 = vrot.slane %v69, %v93
    %v95 = vlaneseq
    %v96 = vshrl.u32 %v95, 7
    %v97 = vsub.s32 %v90, %v96
    %v98 = vrot.slane %v74, %v97
    %v99 = vlaneseq
    %v100 = vshrl.u32 %v99, 7
    %v101 = vsub.s32 %v90, %v100
    %v102 = vrot.slane %v79, %v101
    %v103 = vlaneseq
    %v104 = vshrl.u32 %v103, 7
    %v105 = vsub.s32 %v90, %v104
    %v106 = vrot.slane %v84, %v105
    %vm107 = vcmask 1041409
    %v108 = vsel %vm107, %v98, %v94
    %vm109 = vcmask 1042434
    %v110 = vsel %vm109, %v102, %v108
    %vm111 = vcmask 1043459
    %v112 = vsel %vm111, %v106, %v110
    %114 = vxpose.xlu0.b32.start [1/16] %v112, 128
    %115 = vxpose.xlu0.b32.cont [2/16] 0.0, 128
    %116 = vxpose.xlu0.b32.cont [3/16] 0.0, 128
    %117 = vxpose.xlu0.b32.cont [4/16] 0.0, 128
    %118 = vxpose.xlu0.b32.cont [5/16] 0.0, 128
    %119 = vxpose.xlu0.b32.cont [6/16] 0.0, 128
    %120 = vxpose.xlu0.b32.cont [7/16] 0.0, 128
    %121 = vxpose.xlu0.b32.cont [8/16] 0.0, 128
    %122 = vxpose.xlu0.b32.cont [9/16] 0.0, 128
    %123 = vxpose.xlu0.b32.cont [10/16] 0.0, 128
    %124 = vxpose.xlu0.b32.cont [11/16] 0.0, 128
    %125 = vxpose.xlu0.b32.cont [12/16] 0.0, 128
    %126 = vxpose.xlu0.b32.cont [13/16] 0.0, 128
    %127 = vxpose.xlu0.b32.cont [14/16] 0.0, 128
    %128 = vxpose.xlu0.b32.cont [15/16] 0.0, 128
    %129 = vxpose.xlu0.b32.end [16/16] 0.0, 128
    %v130 = vpop.trf.xlu0
    %v131 = vpop.trf.xlu0
    %v132 = vpop.trf.xlu0
    %v133 = vpop.trf.xlu0
    %v134 = vpop.trf.xlu0
    %v135 = vpop.trf.xlu0
    %v136 = vpop.trf.xlu0
    %v137 = vpop.trf.xlu0
    %v138 = vpop.trf.xlu0
    %v139 = vpop.trf.xlu0
    %v140 = vpop.trf.xlu0
    %v141 = vpop.trf.xlu0
    %v142 = vpop.trf.xlu0
    %v143 = vpop.trf.xlu0
    %v144 = vpop.trf.xlu0
    %v145 = vpop.trf.xlu0
    %vm146 = vcmask 31744
    %v148 = vsel %vm146, %v130, 0
    %v151 = vsel %vm146, %v41, 0
    %153 = vmatprep.subr.mxu0 0.0
    %154 = vmatpush1.xpose.msra.mxu0 0.0
    %155 = vmatprep.subr.mxu0 0.0
    %156 = vmatpush1.xpose.msra.mxu0 0.0
    %157 = vmatprep.subr.mxu0 0.0
    %158 = vmatpush1.xpose.msra.mxu0 0.0
    %159 = vmatprep.subr.mxu0 0.0
    %160 = vmatpush1.xpose.msra.mxu0 0.0
    %161 = vmatprep.subr.mxu0 0.0
    %162 = vmatpush1.xpose.msra.mxu0 0.0
    %163 = vmatprep.subr.mxu0 0.0
    %164 = vmatpush1.xpose.msra.mxu0 0.0
    %165 = vmatprep.subr.mxu0 0.0
    %166 = vmatpush1.xpose.msra.mxu0 0.0
    %167 = vmatprep.subr.mxu0 0.0
    %168 = vmatpush1.xpose.msra.mxu0 0.0
    %169 = vmatprep.subr.mxu0 0.0
    %170 = vmatpush1.xpose.msra.mxu0 0.0
    %171 = vmatprep.subr.mxu0 0.0
    %172 = vmatpush1.xpose.msra.mxu0 0.0
    %173 = vmatprep.subr.mxu0 0.0
    %174 = vmatpush1.xpose.msra.mxu0 0.0
    %175 = vmatprep.subr.mxu0 0.0
    %176 = vmatpush1.xpose.msra.mxu0 0.0
    %177 = vmatprep.subr.mxu0 0.0
    %178 = vmatpush1.xpose.msra.mxu0 0.0
    %179 = vmatprep.subr.mxu0 0.0
    %180 = vmatpush1.xpose.msra.mxu0 0.0
    %181 = vmatprep.subr.mxu0 0.0
    %182 = vmatpush1.xpose.msra.mxu0 0.0
    %183 = vmatprep.subr.mxu0 0.0
    %184 = vmatpush1.xpose.msra.mxu0 %v151
    %185 = vmatprep.subr.mxu0 0.0
    %186 = vmatpush2.xpose.msra.mxu0 0.0
    %187 = vmatprep.subr.mxu0 0.0
    %188 = vmatpush2.xpose.msra.mxu0 0.0
    %189 = vmatprep.subr.mxu0 0.0
    %190 = vmatpush2.xpose.msra.mxu0 0.0
    %191 = vmatprep.subr.mxu0 0.0
    %192 = vmatpush2.xpose.msra.mxu0 0.0
    %193 = vmatprep.subr.mxu0 0.0
    %194 = vmatpush2.xpose.msra.mxu0 0.0
    %195 = vmatprep.subr.mxu0 0.0
    %196 = vmatpush2.xpose.msra.mxu0 0.0
    %197 = vmatprep.subr.mxu0 0.0
    %198 = vmatpush2.xpose.msra.mxu0 0.0
    %199 = vmatprep.subr.mxu0 0.0
    %200 = vmatpush2.xpose.msra.mxu0 0.0
    %201 = vmatprep.subr.mxu0 0.0
    %202 = vmatpush2.xpose.msra.mxu0 0.0
    %203 = vmatprep.subr.mxu0 0.0
    %204 = vmatpush2.xpose.msra.mxu0 0.0
    %205 = vmatprep.subr.mxu0 0.0
    %206 = vmatpush2.xpose.msra.mxu0 0.0
    %207 = vmatprep.subr.mxu0 0.0
    %208 = vmatpush2.xpose.msra.mxu0 0.0
    %209 = vmatprep.subr.mxu0 0.0
    %210 = vmatpush2.xpose.msra.mxu0 0.0
    %211 = vmatprep.subr.mxu0 0.0
    %212 = vmatpush2.xpose.msra.mxu0 0.0
    %213 = vmatprep.subr.mxu0 0.0
    %214 = vmatpush2.xpose.msra.mxu0 0.0
    %215 = vmatprep.subr.mxu0 0.0
    %216 = vmatpush2.xpose.msra.mxu0 0.0
    %217 = vmatprep.mubr.f32.mxu0 0.0
    %218 = vmatmul.mubr.f32.gmra.mxu0 %v148
    %v219 = vpop.f32.mrf.mxu0
    %v220 = vadd.f32 0.0, %v219
    %v221 = vpop.f32.mrf.mxu0
    %222 = vdwg.mxu0
    %v224 = vlaneseq
    %v225 = vshrl.u32 %v224, 7
    %v226 = vsub.s32 %v90, %v225
    %v227 = vrot.slane %v47, %v226
    %v228 = vsel %vm109, %v227, %v227
    %v229 = vsel %vm111, %v227, %v228
    %v231 = vrcp.pop %v229
    %v232 = vmul.f32 %v220, %v231
    %233 = vxpose.xlu0.b32.start [1/16] %v41, 128
    %234 = vxpose.xlu0.b32.cont [2/16] 0.0, 128
    %235 = vxpose.xlu0.b32.cont [3/16] 0.0, 128
    %236 = vxpose.xlu0.b32.cont [4/16] 0.0, 128
    %237 = vxpose.xlu0.b32.cont [5/16] 0.0, 128
    %238 = vxpose.xlu0.b32.cont [6/16] 0.0, 128
    %239 = vxpose.xlu0.b32.cont [7/16] 0.0, 128
    %240 = vxpose.xlu0.b32.cont [8/16] 0.0, 128
    %241 = vxpose.xlu0.b32.cont [9/16] 0.0, 128
    %242 = vxpose.xlu0.b32.cont [10/16] 0.0, 128
    %243 = vxpose.xlu0.b32.cont [11/16] 0.0, 128
    %244 = vxpose.xlu0.b32.cont [12/16] 0.0, 128
    %245 = vxpose.xlu0.b32.cont [13/16] 0.0, 128
    %246 = vxpose.xlu0.b32.cont [14/16] 0.0, 128
    %247 = vxpose.xlu0.b32.cont [15/16] 0.0, 128
    %248 = vxpose.xlu0.b32.end [16/16] 0.0, 128
    %v249 = vpop.trf.xlu0
    %v250 = vpop.trf.xlu0
    %v251 = vpop.trf.xlu0
    %v252 = vpop.trf.xlu0
    %v253 = vpop.trf.xlu0
    %v254 = vpop.trf.xlu0
    %v255 = vpop.trf.xlu0
    %v256 = vpop.trf.xlu0
    %v257 = vpop.trf.xlu0
    %v258 = vpop.trf.xlu0
    %v259 = vpop.trf.xlu0
    %v260 = vpop.trf.xlu0
    %v261 = vpop.trf.xlu0
    %v262 = vpop.trf.xlu0
    %v263 = vpop.trf.xlu0
    %v264 = vpop.trf.xlu0
    %vm265 = vcmask 15360
    %v267 = vsel %vm265, %v249, 0
    %v270 = vsel %vm265, %v232, 0
    %272 = vmatprep.subr.mxu0 0.0
    %273 = vmatpush1.xpose.msra.mxu0 0.0
    %274 = vmatprep.subr.mxu0 0.0
    %275 = vmatpush1.xpose.msra.mxu0 0.0
    %276 = vmatprep.subr.mxu0 0.0
    %277 = vmatpush1.xpose.msra.mxu0 0.0
    %278 = vmatprep.subr.mxu0 0.0
    %279 = vmatpush1.xpose.msra.mxu0 0.0
    %280 = vmatprep.subr.mxu0 0.0
    %281 = vmatpush1.xpose.msra.mxu0 0.0
    %282 = vmatprep.subr.mxu0 0.0
    %283 = vmatpush1.xpose.msra.mxu0 0.0
    %284 = vmatprep.subr.mxu0 0.0
    %285 = vmatpush1.xpose.msra.mxu0 0.0
    %286 = vmatprep.subr.mxu0 0.0
    %287 = vmatpush1.xpose.msra.mxu0 0.0
    %288 = vmatprep.subr.mxu0 0.0
    %289 = vmatpush1.xpose.msra.mxu0 0.0
    %290 = vmatprep.subr.mxu0 0.0
    %291 = vmatpush1.xpose.msra.mxu0 0.0
    %292 = vmatprep.subr.mxu0 0.0
    %293 = vmatpush1.xpose.msra.mxu0 0.0
    %294 = vmatprep.subr.mxu0 0.0
    %295 = vmatpush1.xpose.msra.mxu0 0.0
    %296 = vmatprep.subr.mxu0 0.0
    %297 = vmatpush1.xpose.msra.mxu0 0.0
    %298 = vmatprep.subr.mxu0 0.0
    %299 = vmatpush1.xpose.msra.mxu0 0.0
    %300 = vmatprep.subr.mxu0 0.0
    %301 = vmatpush1.xpose.msra.mxu0 0.0
    %302 = vmatprep.subr.mxu0 0.0
    %303 = vmatpush1.xpose.msra.mxu0 %v270
    %304 = vmatprep.subr.mxu0 0.0
    %305 = vmatpush2.xpose.msra.mxu0 0.0
    %306 = vmatprep.subr.mxu0 0.0
    %307 = vmatpush2.xpose.msra.mxu0 0.0
    %308 = vmatprep.subr.mxu0 0.0
    %309 = vmatpush2.xpose.msra.mxu0 0.0
    %310 = vmatprep.subr.mxu0 0.0
    %311 = vmatpush2.xpose.msra.mxu0 0.0
    %312 = vmatprep.subr.mxu0 0.0
    %313 = vmatpush2.xpose.msra.mxu0 0.0
    %314 = vmatprep.subr.mxu0 0.0
    %315 = vmatpush2.xpose.msra.mxu0 0.0
    %316 = vmatprep.subr.mxu0 0.0
    %317 = vmatpush2.xpose.msra.mxu0 0.0
    %318 = vmatprep.subr.mxu0 0.0
    %319 = vmatpush2.xpose.msra.mxu0 0.0
    %320 = vmatprep.subr.mxu0 0.0
    %321 = vmatpush2.xpose.msra.mxu0 0.0
    %322 = vmatprep.subr.mxu0 0.0
    %323 = vmatpush2.xpose.msra.mxu0 0.0
    %324 = vmatprep.subr.mxu0 0.0
    %325 = vmatpush2.xpose.msra.mxu0 0.0
    %326 = vmatprep.subr.mxu0 0.0
    %327 = vmatpush2.xpose.msra.mxu0 0.0
    %328 = vmatprep.subr.mxu0 0.0
    %329 = vmatpush2.xpose.msra.mxu0 0.0
    %330 = vmatprep.subr.mxu0 0.0
    %331 = vmatpush2.xpose.msra.mxu0 0.0
    %332 = vmatprep.subr.mxu0 0.0
    %333 = vmatpush2.xpose.msra.mxu0 0.0
    %334 = vmatprep.subr.mxu0 0.0
    %335 = vmatpush2.xpose.msra.mxu0 0.0
    %336 = vmatprep.mubr.f32.mxu0 0.0
    %337 = vmatmul.mubr.f32.gmra.mxu0 %v267
    %v338 = vpop.f32.mrf.mxu0
    %v339 = vadd.f32 0.0, %v338
    %v340 = vpop.f32.mrf.mxu0
    %341 = vdwg.mxu0
    %v342 = vlaneseq
    %v343 = vshrl.u32 %v342, 7
    %v344 = vsub.s32 0, %v343
    %v345 = vrot.slane %v339, %v344
    %347 = vbcast.lane.b32.xlu0 %v345, 256
    %v348 = vpop.permute.xlu0 %347
    %v349 = vlaneseq
    %v350 = vshrl.u32 %v349, 7
    %v351 = vsub.s32 1, %v350
    %v352 = vrot.slane %v339, %v351
    %354 = vbcast.lane.b32.xlu0 %v352, 256
    %v355 = vpop.permute.xlu0 %354
    %v356 = vlaneseq
    %v357 = vshrl.u32 %v356, 7
    %v358 = vsub.s32 2, %v357
    %v359 = vrot.slane %v339, %v358
    %361 = vbcast.lane.b32.xlu0 %v359, 256
    %v362 = vpop.permute.xlu0 %361
    %v363 = vlaneseq
    %v364 = vshrl.u32 %v363, 7
    %v365 = vsub.s32 3, %v364
    %v366 = vrot.slane %v339, %v365
    %368 = vbcast.lane.b32.xlu0 %v366, 256
    %v369 = vpop.permute.xlu0 %368
    %v375 = vunpack.c.l.s4 839922192
    %v376 = vunpack.c.0.s8 %v375
    %v377 = vlaneseq
    %v378 = vshrl.u32 %v377, 7
    %v379 = vsub.s32 %v376, %v378
    %v380 = vrot.slane %v348, %v379
    %v382 = vunpack.c.l.s4 839922192
    %v383 = vunpack.c.0.s8 %v382
    %v384 = vlaneseq
    %v385 = vshrl.u32 %v384, 7
    %v386 = vsub.s32 %v383, %v385
    %v387 = vrot.slane %v355, %v386
    %v389 = vunpack.c.l.s4 839922192
    %v390 = vunpack.c.0.s8 %v389
    %v391 = vlaneseq
    %v392 = vshrl.u32 %v391, 7
    %v393 = vsub.s32 %v390, %v392
    %v394 = vrot.slane %v362, %v393
    %v396 = vunpack.c.l.s4 839922192
    %v397 = vunpack.c.0.s8 %v396
    %v398 = vlaneseq
    %v399 = vshrl.u32 %v398, 7
    %v400 = vsub.s32 %v397, %v399
    %v401 = vrot.slane %v369, %v400
    %v406 = vsub.f32 %v48, %v380
    %v407 = vsub.f32 %v49, %v387
    %v408 = vsub.f32 %v50, %v394
    %v409 = vsub.f32 %v51, %v401
    %v410 = vmul.f32 %v406, %v406
    %v411 = vmul.f32 %v407, %v407
    %v412 = vmul.f32 %v408, %v408
    %v413 = vmul.f32 %v409, %v409
    %v418 = vcombine.high %v410, %v410
    %v419 = vcombine.high %v411, %v411
    %v420 = vcombine.high %v412, %v412
    %v421 = vcombine.high %v413, %v413
    %v426 = vsel %vm64, %v410, 0.0
    %v427 = vsel %vm64, %v418, 0.0
    %v428 = vadd.f32 %v426, %v427
    %429 = vadd.xlane.f32.xlu0 %v428
    %v430 = vpop.xlane.xlu0 %429
    %v431 = vsel %vm64, %v411, 0.0
    %v432 = vsel %vm64, %v419, 0.0
    %v433 = vadd.f32 %v431, %v432
    %434 = vadd.xlane.f32.xlu0 %v433
    %v435 = vpop.xlane.xlu0 %434
    %v436 = vsel %vm64, %v412, 0.0
    %v437 = vsel %vm64, %v420, 0.0
    %v438 = vadd.f32 %v436, %v437
    %439 = vadd.xlane.f32.xlu0 %v438
    %v440 = vpop.xlane.xlu0 %439
    %v441 = vsel %vm64, %v413, 0.0
    %v442 = vsel %vm64, %v421, 0.0
    %v443 = vadd.f32 %v441, %v442
    %444 = vadd.xlane.f32.xlu0 %v443
    %v445 = vpop.xlane.xlu0 %444
    %v450 = vlaneseq
    %v451 = vshrl.u32 %v450, 7
    %v452 = vsub.s32 %v90, %v451
    %v453 = vrot.slane %v430, %v452
    %v454 = vlaneseq
    %v455 = vshrl.u32 %v454, 7
    %v456 = vsub.s32 %v90, %v455
    %v457 = vrot.slane %v435, %v456
    %v458 = vlaneseq
    %v459 = vshrl.u32 %v458, 7
    %v460 = vsub.s32 %v90, %v459
    %v461 = vrot.slane %v440, %v460
    %v462 = vlaneseq
    %v463 = vshrl.u32 %v462, 7
    %v464 = vsub.s32 %v90, %v463
    %v465 = vrot.slane %v445, %v464
    %v466 = vsel %vm107, %v457, %v453
    %v467 = vsel %vm109, %v461, %v466
    %v468 = vsel %vm111, %v465, %v467
    %470 = vxpose.xlu0.b32.start [1/16] %v468, 128
    %471 = vxpose.xlu0.b32.cont [2/16] 0.0, 128
    %472 = vxpose.xlu0.b32.cont [3/16] 0.0, 128
    %473 = vxpose.xlu0.b32.cont [4/16] 0.0, 128
    %474 = vxpose.xlu0.b32.cont [5/16] 0.0, 128
    %475 = vxpose.xlu0.b32.cont [6/16] 0.0, 128
    %476 = vxpose.xlu0.b32.cont [7/16] 0.0, 128
    %477 = vxpose.xlu0.b32.cont [8/16] 0.0, 128
    %478 = vxpose.xlu0.b32.cont [9/16] 0.0, 128
    %479 = vxpose.xlu0.b32.cont [10/16] 0.0, 128
    %480 = vxpose.xlu0.b32.cont [11/16] 0.0, 128
    %481 = vxpose.xlu0.b32.cont [12/16] 0.0, 128
    %482 = vxpose.xlu0.b32.cont [13/16] 0.0, 128
    %483 = vxpose.xlu0.b32.cont [14/16] 0.0, 128
    %484 = vxpose.xlu0.b32.cont [15/16] 0.0, 128
    %485 = vxpose.xlu0.b32.end [16/16] 0.0, 128
    %v486 = vpop.trf.xlu0
    %v487 = vpop.trf.xlu0
    %v488 = vpop.trf.xlu0
    %v489 = vpop.trf.xlu0
    %v490 = vpop.trf.xlu0
    %v491 = vpop.trf.xlu0
    %v492 = vpop.trf.xlu0
    %v493 = vpop.trf.xlu0
    %v494 = vpop.trf.xlu0
    %v495 = vpop.trf.xlu0
    %v496 = vpop.trf.xlu0
    %v497 = vpop.trf.xlu0
    %v498 = vpop.trf.xlu0
    %v499 = vpop.trf.xlu0
    %v500 = vpop.trf.xlu0
    %v501 = vpop.trf.xlu0
    %v503 = vsel %vm146, %v486, 0
    %505 = vmatprep.subr.mxu0 0.0
    %506 = vmatpush1.xpose.msra.mxu0 0.0
    %507 = vmatprep.subr.mxu0 0.0
    %508 = vmatpush1.xpose.msra.mxu0 0.0
    %509 = vmatprep.subr.mxu0 0.0
    %510 = vmatpush1.xpose.msra.mxu0 0.0
    %511 = vmatprep.subr.mxu0 0.0
    %512 = vmatpush1.xpose.msra.mxu0 0.0
    %513 = vmatprep.subr.mxu0 0.0
    %514 = vmatpush1.xpose.msra.mxu0 0.0
    %515 = vmatprep.subr.mxu0 0.0
    %516 = vmatpush1.xpose.msra.mxu0 0.0
    %517 = vmatprep.subr.mxu0 0.0
    %518 = vmatpush1.xpose.msra.mxu0 0.0
    %519 = vmatprep.subr.mxu0 0.0
    %520 = vmatpush1.xpose.msra.mxu0 0.0
    %521 = vmatprep.subr.mxu0 0.0
    %522 = vmatpush1.xpose.msra.mxu0 0.0
    %523 = vmatprep.subr.mxu0 0.0
    %524 = vmatpush1.xpose.msra.mxu0 0.0
    %525 = vmatprep.subr.mxu0 0.0
    %526 = vmatpush1.xpose.msra.mxu0 0.0
    %527 = vmatprep.subr.mxu0 0.0
    %528 = vmatpush1.xpose.msra.mxu0 0.0
    %529 = vmatprep.subr.mxu0 0.0
    %530 = vmatpush1.xpose.msra.mxu0 0.0
    %531 = vmatprep.subr.mxu0 0.0
    %532 = vmatpush1.xpose.msra.mxu0 0.0
    %533 = vmatprep.subr.mxu0 0.0
    %534 = vmatpush1.xpose.msra.mxu0 0.0
    %535 = vmatprep.subr.mxu0 0.0
    %536 = vmatpush1.xpose.msra.mxu0 %v151
    %537 = vmatprep.subr.mxu0 0.0
    %538 = vmatpush2.xpose.msra.mxu0 0.0
    %539 = vmatprep.subr.mxu0 0.0
    %540 = vmatpush2.xpose.msra.mxu0 0.0
    %541 = vmatprep.subr.mxu0 0.0
    %542 = vmatpush2.xpose.msra.mxu0 0.0
    %543 = vmatprep.subr.mxu0 0.0
    %544 = vmatpush2.xpose.msra.mxu0 0.0
    %545 = vmatprep.subr.mxu0 0.0
    %546 = vmatpush2.xpose.msra.mxu0 0.0
    %547 = vmatprep.subr.mxu0 0.0
    %548 = vmatpush2.xpose.msra.mxu0 0.0
    %549 = vmatprep.subr.mxu0 0.0
    %550 = vmatpush2.xpose.msra.mxu0 0.0
    %551 = vmatprep.subr.mxu0 0.0
    %552 = vmatpush2.xpose.msra.mxu0 0.0
    %553 = vmatprep.subr.mxu0 0.0
    %554 = vmatpush2.xpose.msra.mxu0 0.0
    %555 = vmatprep.subr.mxu0 0.0
    %556 = vmatpush2.xpose.msra.mxu0 0.0
    %557 = vmatprep.subr.mxu0 0.0
    %558 = vmatpush2.xpose.msra.mxu0 0.0
    %559 = vmatprep.subr.mxu0 0.0
    %560 = vmatpush2.xpose.msra.mxu0 0.0
    %561 = vmatprep.subr.mxu0 0.0
    %562 = vmatpush2.xpose.msra.mxu0 0.0
    %563 = vmatprep.subr.mxu0 0.0
    %564 = vmatpush2.xpose.msra.mxu0 0.0
    %565 = vmatprep.subr.mxu0 0.0
    %566 = vmatpush2.xpose.msra.mxu0 0.0
    %567 = vmatprep.subr.mxu0 0.0
    %568 = vmatpush2.xpose.msra.mxu0 0.0
    %569 = vmatprep.mubr.f32.mxu0 0.0
    %570 = vmatmul.mubr.f32.gmra.mxu0 %v503
    %v571 = vpop.f32.mrf.mxu0
    %v572 = vadd.f32 0.0, %v571
    %v573 = vpop.f32.mrf.mxu0
    %574 = vdwg.mxu0
    %v575 = vmul.f32 %v572, %v231
    %v576 = vadd.f32 %v575, 1e-05
    %v577 = vrsqrt.pop %v576
    %v578 = vld [vmem:[%s2] sm:$0xf]
    %v579 = vmul.f32 %v578, %v577
    %v580 = vld [vmem:[%s3] sm:$0xf]
    %v581 = vmul.f32 %v232, %v579
    %v582 = vsub.f32 %v580, %v581
    %v584 = vrot.slane %v582, 4
    %v586 = vsel %vm64, %v579, %v584
    %v588 = vsel %vm265, %v586, 0
    %590 = vmatprep.subr.mxu0 0.0
    %591 = vmatpush1.xpose.msra.mxu0 0.0
    %592 = vmatprep.subr.mxu0 0.0
    %593 = vmatpush1.xpose.msra.mxu0 0.0
    %594 = vmatprep.subr.mxu0 0.0
    %595 = vmatpush1.xpose.msra.mxu0 0.0
    %596 = vmatprep.subr.mxu0 0.0
    %597 = vmatpush1.xpose.msra.mxu0 0.0
    %598 = vmatprep.subr.mxu0 0.0
    %599 = vmatpush1.xpose.msra.mxu0 0.0
    %600 = vmatprep.subr.mxu0 0.0
    %601 = vmatpush1.xpose.msra.mxu0 0.0
    %602 = vmatprep.subr.mxu0 0.0
    %603 = vmatpush1.xpose.msra.mxu0 0.0
    %604 = vmatprep.subr.mxu0 0.0
    %605 = vmatpush1.xpose.msra.mxu0 0.0
    %606 = vmatprep.subr.mxu0 0.0
    %607 = vmatpush1.xpose.msra.mxu0 0.0
    %608 = vmatprep.subr.mxu0 0.0
    %609 = vmatpush1.xpose.msra.mxu0 0.0
    %610 = vmatprep.subr.mxu0 0.0
    %611 = vmatpush1.xpose.msra.mxu0 0.0
    %612 = vmatprep.subr.mxu0 0.0
    %613 = vmatpush1.xpose.msra.mxu0 0.0
    %614 = vmatprep.subr.mxu0 0.0
    %615 = vmatpush1.xpose.msra.mxu0 0.0
    %616 = vmatprep.subr.mxu0 0.0
    %617 = vmatpush1.xpose.msra.mxu0 0.0
    %618 = vmatprep.subr.mxu0 0.0
    %619 = vmatpush1.xpose.msra.mxu0 0.0
    %620 = vmatprep.subr.mxu0 0.0
    %621 = vmatpush1.xpose.msra.mxu0 %v588
    %622 = vmatprep.subr.mxu0 0.0
    %623 = vmatpush2.xpose.msra.mxu0 0.0
    %624 = vmatprep.subr.mxu0 0.0
    %625 = vmatpush2.xpose.msra.mxu0 0.0
    %626 = vmatprep.subr.mxu0 0.0
    %627 = vmatpush2.xpose.msra.mxu0 0.0
    %628 = vmatprep.subr.mxu0 0.0
    %629 = vmatpush2.xpose.msra.mxu0 0.0
    %630 = vmatprep.subr.mxu0 0.0
    %631 = vmatpush2.xpose.msra.mxu0 0.0
    %632 = vmatprep.subr.mxu0 0.0
    %633 = vmatpush2.xpose.msra.mxu0 0.0
    %634 = vmatprep.subr.mxu0 0.0
    %635 = vmatpush2.xpose.msra.mxu0 0.0
    %636 = vmatprep.subr.mxu0 0.0
    %637 = vmatpush2.xpose.msra.mxu0 0.0
    %638 = vmatprep.subr.mxu0 0.0
    %639 = vmatpush2.xpose.msra.mxu0 0.0
    %640 = vmatprep.subr.mxu0 0.0
    %641 = vmatpush2.xpose.msra.mxu0 0.0
    %642 = vmatprep.subr.mxu0 0.0
    %643 = vmatpush2.xpose.msra.mxu0 0.0
    %644 = vmatprep.subr.mxu0 0.0
    %645 = vmatpush2.xpose.msra.mxu0 0.0
    %646 = vmatprep.subr.mxu0 0.0
    %647 = vmatpush2.xpose.msra.mxu0 0.0
    %648 = vmatprep.subr.mxu0 0.0
    %649 = vmatpush2.xpose.msra.mxu0 0.0
    %650 = vmatprep.subr.mxu0 0.0
    %651 = vmatpush2.xpose.msra.mxu0 0.0
    %652 = vmatprep.subr.mxu0 0.0
    %653 = vmatpush2.xpose.msra.mxu0 0.0
    %654 = vmatprep.mubr.f32.mxu0 0.0
    %655 = vmatmul.mubr.f32.gmra.mxu0 %v267
    %v656 = vpop.f32.mrf.mxu0
    %v657 = vadd.f32 0.0, %v656
    %v658 = vpop.f32.mrf.mxu0
    %659 = vdwg.mxu0
    %v660 = vlaneseq
    %v661 = vshrl.u32 %v660, 7
    %v662 = vsub.s32 0, %v661
    %v663 = vrot.slane %v657, %v662
    %665 = vbcast.lane.b32.xlu0 %v663, 256
    %v666 = vpop.permute.xlu0 %665
    %v667 = vlaneseq
    %v668 = vshrl.u32 %v667, 7
    %v669 = vsub.s32 1, %v668
    %v670 = vrot.slane %v657, %v669
    %672 = vbcast.lane.b32.xlu0 %v670, 256
    %v673 = vpop.permute.xlu0 %672
    %v674 = vlaneseq
    %v675 = vshrl.u32 %v674, 7
    %v676 = vsub.s32 2, %v675
    %v677 = vrot.slane %v657, %v676
    %679 = vbcast.lane.b32.xlu0 %v677, 256
    %v680 = vpop.permute.xlu0 %679
    %v681 = vlaneseq
    %v682 = vshrl.u32 %v681, 7
    %v683 = vsub.s32 3, %v682
    %v684 = vrot.slane %v657, %v683
    %686 = vbcast.lane.b32.xlu0 %v684, 256
    %v687 = vpop.permute.xlu0 %686
    %v693 = vunpack.c.l.s4 839922192
    %v694 = vunpack.c.0.s8 %v693
    %v695 = vlaneseq
    %v696 = vshrl.u32 %v695, 7
    %v697 = vsub.s32 %v694, %v696
    %v698 = vrot.slane %v666, %v697
    %v700 = vunpack.c.l.s4 839922192
    %v701 = vunpack.c.0.s8 %v700
    %v702 = vlaneseq
    %v703 = vshrl.u32 %v702, 7
    %v704 = vsub.s32 %v701, %v703
    %v705 = vrot.slane %v673, %v704
    %v707 = vunpack.c.l.s4 839922192
    %v708 = vunpack.c.0.s8 %v707
    %v709 = vlaneseq
    %v710 = vshrl.u32 %v709, 7
    %v711 = vsub.s32 %v708, %v710
    %v712 = vrot.slane %v680, %v711
    %v714 = vunpack.c.l.s4 839922192
    %v715 = vunpack.c.0.s8 %v714
    %v716 = vlaneseq
    %v717 = vshrl.u32 %v716, 7
    %v718 = vsub.s32 %v715, %v717
    %v719 = vrot.slane %v687, %v718
    %v724 = vmul.f32 %v48, %v698
    %v725 = vmul.f32 %v49, %v705
    %v726 = vmul.f32 %v50, %v712
    %v727 = vmul.f32 %v51, %v719
    %s729 = sor.u32 256, 4
    %730 = vbcast.lane.b32.xlu0 %v663, %s729
    %v731 = vpop.permute.xlu0 %730
    %s733 = sor.u32 256, 4
    %734 = vbcast.lane.b32.xlu0 %v670, %s733
    %v735 = vpop.permute.xlu0 %734
    %s737 = sor.u32 256, 4
    %738 = vbcast.lane.b32.xlu0 %v677, %s737
    %v739 = vpop.permute.xlu0 %738
    %s741 = sor.u32 256, 4
    %742 = vbcast.lane.b32.xlu0 %v684, %s741
    %v743 = vpop.permute.xlu0 %742
    %v749 = vunpack.c.l.s4 839922192
    %v750 = vunpack.c.0.s8 %v749
    %v751 = vlaneseq
    %v752 = vshrl.u32 %v751, 7
    %v753 = vsub.s32 %v750, %v752
    %v754 = vrot.slane %v731, %v753
    %v756 = vunpack.c.l.s4 839922192
    %v757 = vunpack.c.0.s8 %v756
    %v758 = vlaneseq
    %v759 = vshrl.u32 %v758, 7
    %v760 = vsub.s32 %v757, %v759
    %v761 = vrot.slane %v735, %v760
    %v763 = vunpack.c.l.s4 839922192
    %v764 = vunpack.c.0.s8 %v763
    %v765 = vlaneseq
    %v766 = vshrl.u32 %v765, 7
    %v767 = vsub.s32 %v764, %v766
    %v768 = vrot.slane %v739, %v767
    %v770 = vunpack.c.l.s4 839922192
    %v771 = vunpack.c.0.s8 %v770
    %v772 = vlaneseq
    %v773 = vshrl.u32 %v772, 7
    %v774 = vsub.s32 %v771, %v773
    %v775 = vrot.slane %v743, %v774
    %v780 = vadd.f32 %v724, %v754
    %v781 = vadd.f32 %v725, %v761
    %v782 = vadd.f32 %v726, %v768
    %v783 = vadd.f32 %v727, %v775
    %784 = vst [vmem:[#allocation5] sm:$0xff] %v780
    %785 = vst [vmem:[#allocation5 + $0x8] sm:$0xff] %v781
    %786 = vst [vmem:[#allocation5 + $0x10] sm:$0xff] %v782
    %787 = vst [vmem:[#allocation5 + $0x18] sm:$0xff] %v783
    // Predicated region
    $region22: #{tpu_custom_call.1} parent=1 // pred_check
      _
    $region23: #{tpu_custom_call.1} parent=1 // pred_check_branch
      %789 = sbr.rel (0) target = $region25
    $region24: #{tpu_custom_call.1} parent=1 // pred_region
      %s791 = ssub.s32 512, 512
      %792 = vsyncadd [#allocation4], %s791
      %s793 = sshll.u32 [#allocation5], 4
      %s794 = int_to_ptr.vmem [resolvable:$true] %s793
      %799 = dma.vmem_to_hbm [thread:$0]  %s794, 512, %s4, [#allocation4], 128, 128, 8
    $region25: #{tpu_custom_call.1} parent=1 // pred_fallthru
      _
    // Predicated region
    $region26: #{tpu_custom_call.1} parent=1 // pred_check
      _
    $region27: #{tpu_custom_call.1} parent=1 // pred_check_branch
      %801 = sbr.rel (0) target = $region29
    $region28: #{tpu_custom_call.1} parent=1 // pred_region
      %802 = dma.done [#allocation4], 512
    $region29: #{tpu_custom_call.1} parent=1 // pred_fallthru
      _
    %803 = vsyncpa [#allocation3], 1
    %804 = vsyncpa [#allocation4], 1

</llo_original>
